<compile_context>
chip_gen: v7x
topology: tpu7x:2x2x1
jax: 0.10.0
libtpu: 0.0.40
codegen_flags: <defaults>
</compile_context>

<pallas_src>
import enum
import math

import jax
import jax.numpy as jnp
from jax.experimental import pallas as pl
from jax.experimental.pallas import tpu as pltpu


class ResetMode(enum.Enum):
    HARD = "hard"
    SOFT = "soft"
    SOFT_CONSTANT = "soft_constant"


# ----------------------------- Pallas kernels ------------------------------ #
# Scalar parameters arrive as an SMEM (1,) f32 ref; spike/update may be a
# narrower dtype and are cast to v's dtype on the VPU (free, VALU has huge slack).

def _hard_reset_kernel(vreset_ref, v_ref, spike_ref, o_ref):
    v = v_ref[...]
    s = spike_ref[...].astype(v.dtype)
    v_reset = vreset_ref[0].astype(v.dtype)
    # Exact match to HardUpdateAfterSpike: v*(1-s) + v_reset*s
    o_ref[...] = v * (1 - s) + v_reset * s


def _soft_const_reset_kernel(dv_ref, v_ref, spike_ref, o_ref):
    v = v_ref[...]
    s = spike_ref[...].astype(v.dtype)
    dv = dv_ref[0].astype(v.dtype)
    # SoftUpdateAfterSpike(value=-dv): v + (-dv)*s
    o_ref[...] = v - dv * s


def _soft_reset_kernel(v_ref, spike_ref, update_ref, o_ref):
    v = v_ref[...]
    s = spike_ref[...].astype(v.dtype)
    u = update_ref[...].astype(v.dtype)
    # forward passes -update: v + s*(-update)
    o_ref[...] = v - u * s


# ------------------------------- Wrapper ----------------------------------- #

def _cdiv(a: int, b: int) -> int:
    return -(-a // b)


def _sublane_quantum(dtype) -> int:
    # f32 -> 8, bf16/f16 -> 16, int8/fp8/bool -> 32
    return {4: 8, 2: 16, 1: 32}.get(jnp.dtype(dtype).itemsize, 8)


def _lane_dense_width(total: int):
    """Largest 128-multiple divisor of `total` (capped at 4096); None if ragged."""
    for cand in (4096, 2048, 1024, 512, 256, 128):
        if total % cand == 0:
            return cand
    return None


def _elementwise_pallas(kernel, scalars, tensors, *, donate_v=False,
                        target_tile_bytes=2 << 20, vmem_limit_bytes=48 << 20):
    """Run an elementwise kernel over same-shaped tensors via a lane-dense 2D slab.

    tensors[0] is `v` and defines the output shape/dtype; other tensors may use a
    narrower dtype.  `scalars` are (1,)-shaped f32 arrays routed through SMEM.
    """
    v = tensors[0]
    shape = v.shape
    dtype = v.dtype
    itemsize = jnp.dtype(dtype).itemsize
    total = max(1, math.prod(shape))

    flat = [a.reshape(total) for a in tensors]

    width = _lane_dense_width(total)
    pad = 0
    if width is None:
        # Ragged element count: pad flat buffers to the next 128 multiple only
        # (<=127 elems); the partial boundary *block* is still handled by masking.
        width = 128
        pad = _cdiv(total, width) * width - total
        flat = [jnp.pad(a, (0, pad)) for a in flat]
    padded_total = total + pad
    rows = padded_total // width

    # One block shape must satisfy the tiling quantum of every operand dtype.
    sub = max(_sublane_quantum(a.dtype) for a in tensors)
    sub = max(sub, _sublane_quantum(dtype))

    # ~target_tile_bytes per (widest-dtype) buffer, rounded to the sublane quantum.
    tr_cap = max(sub, (target_tile_bytes // (width * itemsize)) // sub * sub)
    # Keep >= 2 grid steps when possible so ("parallel",) can use both v7x TCs.
    half_rows = max(sub, _cdiv(_cdiv(rows, 2), sub) * sub)
    tr = min(tr_cap, half_rows)

    grid = (_cdiv(rows, tr),)  # partial boundary block handled by Pallas masking
    spec = pl.BlockSpec((tr, width), lambda i: (i, 0))

    args2d = [a.reshape(rows, width) for a in flat]
    in_specs = ([pl.BlockSpec(memory_space=pltpu.MemorySpace.SMEM)] * len(scalars)
                + [spec] * len(args2d))

    io_aliases = {}
    if donate_v:
        # v's 2D buffer is reused for the output (in-place membrane-potential update).
        io_aliases = {len(scalars): 0}

    out = pl.pallas_call(
        kernel,
        out_shape=jax.ShapeDtypeStruct((rows, width), dtype),
        grid=grid,
        in_specs=in_specs,
        out_specs=spec,
        input_output_aliases=io_aliases,
        compiler_params=pltpu.CompilerParams(
            dimension_semantics=("parallel",),
            vmem_limit_bytes=vmem_limit_bytes),
    )(*scalars, *args2d)

    out_flat = out.reshape(padded_total)
    if pad:
        out_flat = out_flat[:total]
    return out_flat.reshape(shape)


class ResetAfterSpike:
    """JAX/Pallas port of hnn.snn.ResetAfterSpike (forward pass)."""

    def __init__(self, reset_mode: ResetMode, v_reset=None, dv=None, *,
                 min_pallas_bytes: int = 1 << 20,
                 target_tile_bytes: int = 2 << 20,
                 vmem_limit_bytes: int = 48 << 20,
                 donate_v: bool = False):
        self.reset_mode = reset_mode
        self.v_reset = None
        self.dv = None
        if reset_mode == ResetMode.HARD:
            assert v_reset is not None
            self.v_reset = float(v_reset)
        elif reset_mode == ResetMode.SOFT_CONSTANT:
            assert dv is not None
            self.dv = float(dv)
        else:
            assert reset_mode == ResetMode.SOFT, "Invalid reset mode"
        self.min_pallas_bytes = min_pallas_bytes
        self.target_tile_bytes = target_tile_bytes
        self.vmem_limit_bytes = vmem_limit_bytes
        self.donate_v = donate_v

    # Pure-jnp expression, used for the small-input fast path (fuses with neighbors).
    def _reference(self, v, spike, update):
        s = spike.astype(v.dtype)
        if self.reset_mode == ResetMode.HARD:
            return v * (1 - s) + jnp.asarray(self.v_reset, v.dtype) * s
        if self.reset_mode == ResetMode.SOFT_CONSTANT:
            return v - jnp.asarray(self.dv, v.dtype) * s
        return v - update.astype(v.dtype) * s

    def __call__(self, v, spike, update=None):
        if self.reset_mode == ResetMode.SOFT:
            assert update is not None

        total_bytes = math.prod(v.shape) * jnp.dtype(v.dtype).itemsize if v.shape else 4
        if total_bytes < self.min_pallas_bytes:
            # Below ~one tile the pallas_call launch/reshape overhead dominates.
            return self._reference(v, spike, update)

        kwargs = dict(donate_v=self.donate_v,
                      target_tile_bytes=self.target_tile_bytes,
                      vmem_limit_bytes=self.vmem_limit_bytes)
        if self.reset_mode == ResetMode.HARD:
            scalar = jnp.asarray([self.v_reset], dtype=jnp.float32)
            return _elementwise_pallas(_hard_reset_kernel, [scalar], [v, spike], **kwargs)
        if self.reset_mode == ResetMode.SOFT_CONSTANT:
            scalar = jnp.asarray([self.dv], dtype=jnp.float32)
            return _elementwise_pallas(_soft_const_reset_kernel, [scalar], [v, spike], **kwargs)
        return _elementwise_pallas(_soft_reset_kernel, [], [v, spike, update], **kwargs)


# --------------------------------- Test ------------------------------------ #

if __name__ == "__main__":
    key = jax.random.PRNGKey(0)
    keys = jax.random.split(key, 8)

    # --- small NCHW shapes (fast path: fused jnp, below min_pallas_bytes) ----
    B, C, H, W = 2, 4, 16, 16
    v = jax.random.normal(keys[0], (B, C, H, W), dtype=jnp.float32)
    spike = (jax.random.uniform(keys[1], (B, C, H, W)) > 0.5).astype(jnp.float32)
    update = jax.random.uniform(keys[2], (B, C, H, W), dtype=jnp.float32) + 0.5
    v_reset, dv = 0.0, 1.0

    hard = ResetAfterSpike(ResetMode.HARD, v_reset=v_reset)
    out = jax.block_until_ready(hard(v, spike))
    assert jnp.allclose(out, v * (1.0 - spike) + v_reset * spike, atol=1e-6), "HARD small"

    soft_c = ResetAfterSpike(ResetMode.SOFT_CONSTANT, dv=dv)
    out = jax.block_until_ready(soft_c(v, spike))
    assert jnp.allclose(out, v - dv * spike, atol=1e-6), "SOFT_CONSTANT small"

    soft = ResetAfterSpike(ResetMode.SOFT)
    out = jax.block_until_ready(soft(v, spike, update))
    assert jnp.allclose(out, v - update * spike, atol=1e-6), "SOFT small"

    # --- Pallas path: int8 spike, grid of 2 with a partial boundary block ----
    shape2 = (2, 8, 65, 128)   # 133,120 elems -> width 2048, rows 65, tr 64, grid 2
    v2 = jax.random.normal(keys[3], shape2, dtype=jnp.float32)
    spk2_i8 = (jax.random.uniform(keys[4], shape2) > 0.5).astype(jnp.int8)
    upd2 = jax.random.uniform(keys[5], shape2, dtype=jnp.float32) + 0.5
    s2f = spk2_i8.astype(jnp.float32)

    ref_hard2 = v2 * (1 - s2f) + 0.25 * s2f
    hard2 = ResetAfterSpike(ResetMode.HARD, v_reset=0.25, min_pallas_bytes=0)
    out = jax.block_until_ready(hard2(v2, spk2_i8))
    assert jnp.allclose(out, ref_hard2, atol=1e-6), "HARD pallas"

    ref_softc2 = v2 - 0.5 * s2f
    softc2 = ResetAfterSpike(ResetMode.SOFT_CONSTANT, dv=0.5, min_pallas_bytes=0)
    out = jax.block_until_ready(softc2(v2, spk2_i8))
    assert jnp.allclose(out, ref_softc2, atol=1e-6), "SOFT_CONSTANT pallas"

    ref_soft2 = v2 - upd2 * s2f
    soft2 = ResetAfterSpike(ResetMode.SOFT, min_pallas_bytes=0, donate_v=True)
    out = jax.block_until_ready(soft2(v2, spk2_i8, upd2))
    assert jnp.allclose(out, ref_soft2, atol=1e-6), "SOFT pallas (aliased v)"

    # --- Pallas path: ragged element count (flat pad of <=127 elements) ------
    shape3 = (67, 1001)        # 67,067 elems: no 128-multiple divisor
    v3 = jax.random.normal(keys[6], shape3, dtype=jnp.float32)
    s3 = (jax.random.uniform(keys[7], shape3) > 0.5).astype(jnp.float32)
    ref3 = v3 * (1 - s3) + (-0.5) * s3
    hard3 = ResetAfterSpike(ResetMode.HARD, v_reset=-0.5, min_pallas_bytes=0)
    out3 = jax.block_until_ready(hard3(v3, s3))
    assert jnp.allclose(out3, ref3, atol=1e-6), "HARD pallas (ragged)"

    print("KERNEL_OK")
</pallas_src>

<mosaic_0001>
module attributes {stable_mosaic.version = 11 : i64} {
  func.func @_hard_reset_kernel(%arg0: i32, %arg1: memref<1xf32, #tpu.memory_space<smem>>, %arg2: memref<64x2048xf32, #tpu.memory_space<vmem>>, %arg3: memref<64x2048xi8, #tpu.memory_space<vmem>>, %arg4: memref<64x2048xf32, #tpu.memory_space<vmem>>) attributes {dimension_semantics = [#tpu.dimension_semantics<parallel>], iteration_bounds = array<i64: 2>, scalar_prefetch = 0 : i64, scratch_operands = 0 : i64, tpu.core_type = #tpu.core_type<tc>, window_params = [{transform_indices = @transform_0, window_bounds = array<i64: 1>}, {transform_indices = @transform_1, window_bounds = array<i64: 64, 2048>}, {transform_indices = @transform_2, window_bounds = array<i64: 64, 2048>}, {transform_indices = @transform_3, window_bounds = array<i64: 64, 2048>}]} {
    %c0 = arith.constant 0 : index
    %c0_0 = arith.constant 0 : index
    %0 = vector.load %arg2[%c0, %c0_0] : memref<64x2048xf32, #tpu.memory_space<vmem>>, vector<64x2048xf32>
    %c0_1 = arith.constant 0 : index
    %c0_2 = arith.constant 0 : index
    %1 = vector.load %arg3[%c0_1, %c0_2] : memref<64x2048xi8, #tpu.memory_space<vmem>>, vector<64x2048xi8>
    %2 = arith.sitofp %1 : vector<64x2048xi8> to vector<64x2048xf32>
    %c0_3 = arith.constant 0 : index
    %3 = memref.load %arg1[%c0_3] : memref<1xf32, #tpu.memory_space<smem>>
    %cst = arith.constant 1.000000e+00 : f32
    %4 = vector.broadcast %cst : f32 to vector<64x2048xf32>
    %5 = arith.subf %4, %2 : vector<64x2048xf32>
    %6 = arith.mulf %0, %5 : vector<64x2048xf32>
    %7 = vector.broadcast %3 : f32 to vector<64x2048xf32>
    %8 = arith.mulf %7, %2 : vector<64x2048xf32>
    %9 = arith.addf %6, %8 : vector<64x2048xf32>
    %c0_4 = arith.constant 0 : index
    %c0_5 = arith.constant 0 : index
    %10 = vector.load %arg4[%c0_4, %c0_5] : memref<64x2048xf32, #tpu.memory_space<vmem>>, vector<64x2048xf32>
    tpu.vector_store %arg4[%c0_4, %c0_5], %9 {strides = array<i32>} : memref<64x2048xf32, #tpu.memory_space<vmem>>, vector<64x2048xf32>,
    return
  }
  func.func @transform_0(%arg0: i32) -> i32 {
    %c0_i32 = arith.constant 0 : i32
    %c0_i32_0 = arith.constant 0 : i32
    return %c0_i32 : i32
  }
  func.func @transform_1(%arg0: i32) -> (i32, i32) {
    %c0_i32 = arith.constant 0 : i32
    %c0_i32_0 = arith.constant 0 : i32
    return %arg0, %c0_i32 : i32, i32
  }
  func.func @transform_2(%arg0: i32) -> (i32, i32) {
    %c0_i32 = arith.constant 0 : i32
    %c0_i32_0 = arith.constant 0 : i32
    return %arg0, %c0_i32 : i32, i32
  }
  func.func @transform_3(%arg0: i32) -> (i32, i32) {
    %c0_i32 = arith.constant 0 : i32
    %c0_i32_0 = arith.constant 0 : i32
    return %arg0, %c0_i32 : i32, i32
  }
}

</mosaic_0001>

<llo_original>
// kernel: tpu_custom_call.1
$region0: #{tpu_custom_call.1}
  #allocation0 [shape = 'u32[]', space=smem, size = 0x4, offset = 0x4, fixed_abs, tag = 'smem constant byte address 0x4 - core index']
  #allocation1 [shape = 'u32[144,128]{1,0:T(1,128)}', space=vmem, size = 0x12000, scoped, tag = 'internal scratch']
  #allocation2 [shape = 'f32[1]{0:T(128)S(6)}', space=smem, size = 0x200, scoped, tag = 'scoped memory for tpu_custom_call.1']
  %s0 = inlined_call_operand.<no memory space> [shape: f32[1], index: 0, kind: input, shape index: {}]
  %s1 = inlined_call_operand.hbm [shape: f32[65,2048], index: 1, kind: input, shape index: {}]
  %s2 = inlined_call_operand.hbm [shape: s8[65,2048], index: 2, kind: input, shape index: {}]
  %s3 = inlined_call_operand.hbm [shape: f32[65,2048], index: 3, kind: output, shape index: {}]
  %s4 = sld [smem:[#allocation0]]
  $region53: #{tpu_custom_call.1} parent=0
    _
  %s6 = ssub.s32 1, %s4
  %s7 = scalar_select 0, %s6, %s4
  %8 = sst [smem:[#allocation2]] %s0
  $region1: #{tpu_custom_call.1} parent=0
    #allocation3 [shape = 'u8[1048576]{0}', space=vmem, size = 0x100000, scoped, tag = 'input window, operand 1']
    #allocation4 [shape = 's32[2]{0}', space=sflag, size = 0x8, scoped, tag = 'scoped memory for tpu_custom_call.1']
    #allocation5 [shape = 's32[2]{0}', space=sflag, size = 0x8, scoped, tag = 'scoped memory for tpu_custom_call.1']
    #allocation6 [shape = 'u8[262144]{0}', space=vmem, size = 0x40000, scoped, tag = 'input window, operand 2']
    #allocation7 [shape = 's32[2]{0}', space=sflag, size = 0x8, scoped, tag = 'scoped memory for tpu_custom_call.1']
    #allocation8 [shape = 'u8[1048576]{0}', space=vmem, size = 0x100000, scoped, tag = 'output window, operand 0']
    %9 = vsyncpa [#allocation4], 0
    %s10 = scalar_lea.sflag [#allocation4], 1
    %11 = vsyncpa %s10, 0
    %12 = vsyncpa [#allocation7], 0
    %s13 = scalar_lea.sflag [#allocation7], 1
    %14 = vsyncpa %s13, 0
    %15 = vsyncpa [#allocation5], 0
    %s16 = scalar_lea.sflag [#allocation5], 1
    %17 = vsyncpa %s16, 0
    loop: start=0, step=1, limit=4
    $region2: #{tpu_custom_call.1} parent=1 // loop_pre_header
      _
    $region3: #{tpu_custom_call.1} parent=1 // loop_header
      %s19 = sphi 0, %s23
      %p20 = scmp.ge.s32.totalorder %s19, 4
      %s27 = sphi 0, %s27
      %s29 = sphi 0, %s27
      %s30 = sphi 0, %s29
      %s44 = sphi 0, %s30
      %s50 = sphi 0, %s52
      %s53 = sphi 0, %s50
      %s54 = sphi 0, %s53
      %s70 = sphi 0, %s54
      %s76 = sphi 0, %s78
      %s79 = sphi 0, %s76
      %s80 = sphi 0, %s79
      %s96 = sphi 0, %s80
      %s102 = sphi 0, %s104
      %s105 = sphi 0, %s102
      %s106 = sphi 0, %s105
      %s122 = sphi 0, %s106
    $region4: #{tpu_custom_call.1} parent=1 // loop_header_branch
      %22 = sbr.rel (%p20) target = $region8
    $region5: #{tpu_custom_call.1} parent=1 // loop_body
      %s24 = ssub.s32 %s19, 1
      %s25 = ssub.s32 %s19, 2
      %s26 = sadd.s32 %s19, 1
      %s28 = sadd.s32 %s27, 1
      %p31 = scmp.eq.s32.totalorder %s19, 1
      %p32 = scmp.ne.s32.totalorder %s27, %s29
      %p33 = scmp.eq.s32.totalorder %s19, 0
      %p34 = por %p32, %p33
      %p35 = scmp.ne.s32.totalorder %s27, %s29
      %p36 = scmp.eq.s32.totalorder %s24, 1
      %p37 = por %p35, %p36
      %p38 = scmp.ne.s32.totalorder %s29, %s30
      %p39 = scmp.eq.s32.totalorder %s24, 0
      %p40 = por %p38, %p39
      %p41 = scmp.ne.s32.totalorder %s29, %s30
      %p42 = scmp.eq.s32.totalorder %s25, 1
      %p43 = por %p41, %p42
      %p45 = scmp.ne.s32.totalorder %s30, %s44
      %p46 = scmp.eq.s32.totalorder %s25, 0
      %p47 = por %p45, %p46
      %s48 = ssub.s32 %s19, %s26
      %p49 = scmp.eq.s32.totalorder %s48, 0
      %s51 = sadd.s32 %s50, 1
      %s52 = scalar_select %p49, %s50, %s51
      %p55 = pneg %p49
      %p56 = scmp.eq.s32.totalorder %s19, 1
      %p57 = por %p55, %p56
      %p58 = scmp.ne.s32.totalorder %s50, %s53
      %p59 = scmp.eq.s32.totalorder %s19, 0
      %p60 = por %p58, %p59
      %p61 = scmp.ne.s32.totalorder %s50, %s53
      %p62 = scmp.eq.s32.totalorder %s24, 1
      %p63 = por %p61, %p62
      %p64 = scmp.ne.s32.totalorder %s53, %s54
      %p65 = scmp.eq.s32.totalorder %s24, 0
      %p66 = por %p64, %p65
      %p67 = scmp.ne.s32.totalorder %s53, %s54
      %p68 = scmp.eq.s32.totalorder %s25, 1
      %p69 = por %p67, %p68
      %p71 = scmp.ne.s32.totalorder %s54, %s70
      %p72 = scmp.eq.s32.totalorder %s25, 0
      %p73 = por %p71, %p72
      %s74 = ssub.s32 %s19, %s26
      %p75 = scmp.eq.s32.totalorder %s74, 0
      %s77 = sadd.s32 %s76, 1
      %s78 = scalar_select %p75, %s76, %s77
      %p81 = pneg %p75
      %p82 = scmp.eq.s32.totalorder %s19, 1
      %p83 = por %p81, %p82
      %p84 = scmp.ne.s32.totalorder %s76, %s79
      %p85 = scmp.eq.s32.totalorder %s19, 0
      %p86 = por %p84, %p85
      %p87 = scmp.ne.s32.totalorder %s76, %s79
      %p88 = scmp.eq.s32.totalorder %s24, 1
      %p89 = por %p87, %p88
      %p90 = scmp.ne.s32.totalorder %s79, %s80
      %p91 = scmp.eq.s32.totalorder %s24, 0
      %p92 = por %p90, %p91
      %p93 = scmp.ne.s32.totalorder %s79, %s80
      %p94 = scmp.eq.s32.totalorder %s25, 1
      %p95 = por %p93, %p94
      %p97 = scmp.ne.s32.totalorder %s80, %s96
      %p98 = scmp.eq.s32.totalorder %s25, 0
      %p99 = por %p97, %p98
      %s100 = ssub.s32 %s19, %s26
      %p101 = scmp.eq.s32.totalorder %s100, 0
      %s103 = sadd.s32 %s102, 1
      %s104 = scalar_select %p101, %s102, %s103
      %p107 = pneg %p101
      %p108 = scmp.eq.s32.totalorder %s19, 1
      %p109 = por %p107, %p108
      %p110 = scmp.ne.s32.totalorder %s102, %s105
      %p111 = scmp.eq.s32.totalorder %s19, 0
      %p112 = por %p110, %p111
      %p113 = scmp.ne.s32.totalorder %s102, %s105
      %p114 = scmp.eq.s32.totalorder %s24, 1
      %p115 = por %p113, %p114
      %p116 = scmp.ne.s32.totalorder %s105, %s106
      %p117 = scmp.eq.s32.totalorder %s24, 0
      %p118 = por %p116, %p117
      %p119 = scmp.ne.s32.totalorder %s105, %s106
      %p120 = scmp.eq.s32.totalorder %s25, 1
      %p121 = por %p119, %p120
      %p123 = scmp.ne.s32.totalorder %s106, %s122
      %p124 = scmp.eq.s32.totalorder %s25, 0
      %p125 = por %p123, %p124
      %p126 = scmp.le.s32.totalorder 1, %s19
      %p127 = scmp.lt.s32.totalorder %s19, 3
      %p128 = pnand %p126, %p127
      %p129 = pneg %p128
      // Predicated region
      $region9: #{tpu_custom_call.1} parent=5 // pred_check
        _
      $region10: #{tpu_custom_call.1} parent=5 // pred_check_branch
        %131 = sbr.rel (%p128) target = $region12
      $region11: #{tpu_custom_call.1} parent=5 // pred_region
        %s132 = ssub.s32 %s19, 1
        // Predicated region
        $region13: #{tpu_custom_call.1} parent=11 // pred_check
          %p133 = pneg %p40
        $region14: #{tpu_custom_call.1} parent=11 // pred_check_branch
          %135 = sbr.rel (%p133) target = $region16
        $region15: #{tpu_custom_call.1} parent=11 // pred_region
          _
        $region16: #{tpu_custom_call.1} parent=11 // pred_fallthru
          _
      $region12: #{tpu_custom_call.1} parent=5 // pred_fallthru
        _
      %p136 = scmp.lt.s32.totalorder %s19, 2
      // Predicated region
      $region17: #{tpu_custom_call.1} parent=5 // pred_check
        %p137 = pneg %p136
      $region18: #{tpu_custom_call.1} parent=5 // pred_check_branch
        %139 = sbr.rel (%p137) target = $region20
      $region19: #{tpu_custom_call.1} parent=5 // pred_region
        // Predicated region
        $region21: #{tpu_custom_call.1} parent=19 // pred_check
          %p140 = pneg %p60
        $region22: #{tpu_custom_call.1} parent=19 // pred_check_branch
          %142 = sbr.rel (%p140) target = $region24
        $region23: #{tpu_custom_call.1} parent=19 // pred_region
          %s143 = sand.u32 %s50, 1
          %s144 = scalar_lea.sflag [#allocation4], %s143
          %s145 = sand.u32 %s50, 1
          %s146 = smul.addr %s145, 1024
          %s147 = scalar_lea.vmem [#allocation3], %s146
          %s148 = smul.u32 8, %s19
          %s149 = ssub.s32 9, %s148
          %p150 = scmp.lt.s32.totalorder %s149, 8
          %s151 = scalar_select %p150, %s149, 8
          %s152 = smul.u32 128, %s151
          %s153 = smul.u32 %s152, 16
          %s155 = ssub.s32 16384, %s153
          %156 = vsyncadd %s144, %s155
          %p157 = scmp.ne.s32.totalorder 0, %s153
          %s158 = smul.addr %s148, 16
          %s159 = smul.addr %s158, 128
          %s160 = scalar_lea.hbm %s1, %s159
          %s161 = smul.u32 128, %s151
          %s162 = sshll.u32 %s147, 4
          %s163 = int_to_ptr.vmem [resolvable:$true] %s162
          %s164 = sshll.u32 %s161, 4
          %168 = dma.hbm_to_vmem [thread:$0]  (%p157), %s160, %s164, %s163, %s144, 2048, 2048, 128
        $region24: #{tpu_custom_call.1} parent=19 // pred_fallthru
          _
        // Predicated region
        $region25: #{tpu_custom_call.1} parent=19 // pred_check
          %p169 = pneg %p86
        $region26: #{tpu_custom_call.1} parent=19 // pred_check_branch
          %171 = sbr.rel (%p169) target = $region28
        $region27: #{tpu_custom_call.1} parent=19 // pred_region
          %s172 = sand.u32 %s76, 1
          %s173 = scalar_lea.sflag [#allocation7], %s172
          %s174 = sand.u32 %s76, 1
          %s175 = smul.addr %s174, 256
          %s176 = scalar_lea.vmem [#allocation6], %s175
          %s177 = smul.u32 8, %s19
          %s178 = ssub.s32 9, %s177
          %p179 = scmp.lt.s32.totalorder %s178, 8
          %s180 = scalar_select %p179, %s178, 8
          %s181 = smul.u32 32, %s180
          %s182 = smul.u32 %s181, 16
          %s184 = ssub.s32 4096, %s182
          %185 = vsyncadd %s173, %s184
          %p186 = scmp.ne.s32.totalorder 0, %s182
          %s187 = smul.addr %s177, 16
          %s188 = smul.addr %s187, 32
          %s189 = scalar_lea.hbm %s2, %s188
          %s190 = smul.u32 32, %s180
          %s191 = sshll.u32 %s176, 4
          %s192 = int_to_ptr.vmem [resolvable:$true] %s191
          %s193 = sshll.u32 %s190, 4
          %197 = dma.hbm_to_vmem [thread:$0]  (%p186), %s189, %s193, %s192, %s173, 512, 512, 32
        $region28: #{tpu_custom_call.1} parent=19 // pred_fallthru
          _
      $region20: #{tpu_custom_call.1} parent=5 // pred_fallthru
        _
      %p198 = scmp.le.s32.totalorder 1, %s19
      %p199 = scmp.lt.s32.totalorder %s19, 3
      %p200 = pnand %p198, %p199
      %p201 = pneg %p200
      // Predicated region
      $region29: #{tpu_custom_call.1} parent=5 // pred_check
        _
      $region30: #{tpu_custom_call.1} parent=5 // pred_check_branch
        %203 = sbr.rel (%p200) target = $region32
      $region31: #{tpu_custom_call.1} parent=5 // pred_region
        %s204 = ssub.s32 %s19, 1
        %s205 = sand.u32 %s53, 1
        %s206 = scalar_lea.sflag [#allocation4], %s205
        %s207 = sand.u32 %s53, 1
        %s208 = smul.addr %s207, 1024
        %s209 = scalar_lea.vmem [#allocation3], %s208
        // Predicated region
        $region33: #{tpu_custom_call.1} parent=31 // pred_check
          %p210 = pneg %p66
        $region34: #{tpu_custom_call.1} parent=31 // pred_check_branch
          %212 = sbr.rel (%p210) target = $region36
        $region35: #{tpu_custom_call.1} parent=31 // pred_region
          %213 = dma.done %s206, 16384
        $region36: #{tpu_custom_call.1} parent=31 // pred_fallthru
          _
        %s214 = sand.u32 %s79, 1
        %s215 = scalar_lea.sflag [#allocation7], %s214
        %s216 = sand.u32 %s79, 1
        %s217 = smul.addr %s216, 256
        %s218 = scalar_lea.vmem [#allocation6], %s217
        // Predicated region
        $region37: #{tpu_custom_call.1} parent=31 // pred_check
          %p219 = pneg %p92
        $region38: #{tpu_custom_call.1} parent=31 // pred_check_branch
          %221 = sbr.rel (%p219) target = $region40
        $region39: #{tpu_custom_call.1} parent=31 // pred_region
          %222 = dma.done %s215, 4096
        $region40: #{tpu_custom_call.1} parent=31 // pred_fallthru
          _
        %p223 = pneg %p40
        %p224 = pneg %p37
        %s225 = sand.u32 %s53, 1
        %s226 = scalar_lea.sflag [#allocation4], %s225
        %s227 = sand.u32 %s53, 1
        %s228 = smul.addr %s227, 1024
        %s229 = scalar_lea.vmem [#allocation3], %s228
        %p230 = pneg %p66
        %p231 = pneg %p63
        %s232 = sand.u32 %s79, 1
        %s233 = scalar_lea.sflag [#allocation7], %s232
        %s234 = sand.u32 %s79, 1
        %s235 = smul.addr %s234, 256
        %s236 = scalar_lea.vmem [#allocation6], %s235
        %p237 = pneg %p92
        %p238 = pneg %p89
        %p239 = pneg %p118
        %p240 = pneg %p115
        %s241 = sand.u32 %s105, 1
        %s242 = scalar_lea.sflag [#allocation5], %s241
        %s243 = sand.u32 %s105, 1
        %s244 = smul.addr %s243, 1024
        %s245 = scalar_lea.vmem [#allocation8], %s244
        %s246 = smul.u32 8, %s24
        %s247 = ssub.s32 9, %s246
        %p248 = scmp.lt.s32.totalorder %s247, 8
        %s249 = scalar_select %p248, %s247, 8
        %s250 = smul.u32 128, %s249
        %s251 = smul.u32 %s250, 16
        %s252 = smul.u32 8, %s24
        %s253 = ssub.s32 9, %s252
        %p254 = scmp.lt.s32.totalorder %s253, 8
        %s255 = scalar_select %p254, %s253, 8
        %s256 = smul.u32 32, %s255
        %s257 = smul.u32 %s256, 16
        %s258 = smul.u32 8, %s24
        %s259 = ssub.s32 9, %s258
        %p260 = scmp.lt.s32.totalorder %s259, 8
        %s261 = scalar_select %p260, %s259, 8
        %s262 = smul.u32 128, %s261
        %s263 = smul.u32 %s262, 16
        %v264 = vld [vmem:[%s209] sm:$0xff]
        %v265 = vld [vmem:[%s209 + $0x8] sm:$0xff]
        %v266 = vld [vmem:[%s209 + $0x10] sm:$0xff]
        %v267 = vld [vmem:[%s209 + $0x18] sm:$0xff]
        %v268 = vld [vmem:[%s209 + $0x20] sm:$0xff]
        %v269 = vld [vmem:[%s209 + $0x28] sm:$0xff]
        %v270 = vld [vmem:[%s209 + $0x30] sm:$0xff]
        %v271 = vld [vmem:[%s209 + $0x38] sm:$0xff]
        %v272 = vld [vmem:[%s209 + $0x40] sm:$0xff]
        %v273 = vld [vmem:[%s209 + $0x48] sm:$0xff]
        %v274 = vld [vmem:[%s209 + $0x50] sm:$0xff]
        %v275 = vld [vmem:[%s209 + $0x58] sm:$0xff]
        %v276 = vld [vmem:[%s209 + $0x60] sm:$0xff]
        %v277 = vld [vmem:[%s209 + $0x68] sm:$0xff]
        %v278 = vld [vmem:[%s209 + $0x70] sm:$0xff]
        %v279 = vld [vmem:[%s209 + $0x78] sm:$0xff]
        %v280 = vld [vmem:[%s209 + $0x80] sm:$0xff]
        %v281 = vld [vmem:[%s209 + $0x88] sm:$0xff]
        %v282 = vld [vmem:[%s209 + $0x90] sm:$0xff]
        %v283 = vld [vmem:[%s209 + $0x98] sm:$0xff]
        %v284 = vld [vmem:[%s209 + $0xa0] sm:$0xff]
        %v285 = vld [vmem:[%s209 + $0xa8] sm:$0xff]
        %v286 = vld [vmem:[%s209 + $0xb0] sm:$0xff]
        %v287 = vld [vmem:[%s209 + $0xb8] sm:$0xff]
        %v288 = vld [vmem:[%s209 + $0xc0] sm:$0xff]
        %v289 = vld [vmem:[%s209 + $0xc8] sm:$0xff]
        %v290 = vld [vmem:[%s209 + $0xd0] sm:$0xff]
        %v291 = vld [vmem:[%s209 + $0xd8] sm:$0xff]
        %v292 = vld [vmem:[%s209 + $0xe0] sm:$0xff]
        %v293 = vld [vmem:[%s209 + $0xe8] sm:$0xff]
        %v294 = vld [vmem:[%s209 + $0xf0] sm:$0xff]
        %v295 = vld [vmem:[%s209 + $0xf8] sm:$0xff]
        %v296 = vld [vmem:[%s209 + $0x100] sm:$0xff]
        %v297 = vld [vmem:[%s209 + $0x108] sm:$0xff]
        %v298 = vld [vmem:[%s209 + $0x110] sm:$0xff]
        %v299 = vld [vmem:[%s209 + $0x118] sm:$0xff]
        %v300 = vld [vmem:[%s209 + $0x120] sm:$0xff]
        %v301 = vld [vmem:[%s209 + $0x128] sm:$0xff]
        %v302 = vld [vmem:[%s209 + $0x130] sm:$0xff]
        %v303 = vld [vmem:[%s209 + $0x138] sm:$0xff]
        %v304 = vld [vmem:[%s209 + $0x140] sm:$0xff]
        %v305 = vld [vmem:[%s209 + $0x148] sm:$0xff]
        %v306 = vld [vmem:[%s209 + $0x150] sm:$0xff]
        %v307 = vld [vmem:[%s209 + $0x158] sm:$0xff]
        %v308 = vld [vmem:[%s209 + $0x160] sm:$0xff]
        %v309 = vld [vmem:[%s209 + $0x168] sm:$0xff]
        %v310 = vld [vmem:[%s209 + $0x170] sm:$0xff]
        %v311 = vld [vmem:[%s209 + $0x178] sm:$0xff]
        %v312 = vld [vmem:[%s209 + $0x180] sm:$0xff]
        %v313 = vld [vmem:[%s209 + $0x188] sm:$0xff]
        %v314 = vld [vmem:[%s209 + $0x190] sm:$0xff]
        %v315 = vld [vmem:[%s209 + $0x198] sm:$0xff]
        %v316 = vld [vmem:[%s209 + $0x1a0] sm:$0xff]
        %v317 = vld [vmem:[%s209 + $0x1a8] sm:$0xff]
        %v318 = vld [vmem:[%s209 + $0x1b0] sm:$0xff]
        %v319 = vld [vmem:[%s209 + $0x1b8] sm:$0xff]
        %v320 = vld [vmem:[%s209 + $0x1c0] sm:$0xff]
        %v321 = vld [vmem:[%s209 + $0x1c8] sm:$0xff]
        %v322 = vld [vmem:[%s209 + $0x1d0] sm:$0xff]
        %v323 = vld [vmem:[%s209 + $0x1d8] sm:$0xff]
        %v324 = vld [vmem:[%s209 + $0x1e0] sm:$0xff]
        %v325 = vld [vmem:[%s209 + $0x1e8] sm:$0xff]
        %v326 = vld [vmem:[%s209 + $0x1f0] sm:$0xff]
        %v327 = vld [vmem:[%s209 + $0x1f8] sm:$0xff]
        %v328 = vld [vmem:[%s209 + $0x200] sm:$0xff]
        %v329 = vld [vmem:[%s209 + $0x208] sm:$0xff]
        %v330 = vld [vmem:[%s209 + $0x210] sm:$0xff]
        %v331 = vld [vmem:[%s209 + $0x218] sm:$0xff]
        %v332 = vld [vmem:[%s209 + $0x220] sm:$0xff]
        %v333 = vld [vmem:[%s209 + $0x228] sm:$0xff]
        %v334 = vld [vmem:[%s209 + $0x230] sm:$0xff]
        %v335 = vld [vmem:[%s209 + $0x238] sm:$0xff]
        %v336 = vld [vmem:[%s209 + $0x240] sm:$0xff]
        %v337 = vld [vmem:[%s209 + $0x248] sm:$0xff]
        %v338 = vld [vmem:[%s209 + $0x250] sm:$0xff]
        %v339 = vld [vmem:[%s209 + $0x258] sm:$0xff]
        %v340 = vld [vmem:[%s209 + $0x260] sm:$0xff]
        %v341 = vld [vmem:[%s209 + $0x268] sm:$0xff]
        %v342 = vld [vmem:[%s209 + $0x270] sm:$0xff]
        %v343 = vld [vmem:[%s209 + $0x278] sm:$0xff]
        %v344 = vld [vmem:[%s209 + $0x280] sm:$0xff]
        %v345 = vld [vmem:[%s209 + $0x288] sm:$0xff]
        %v346 = vld [vmem:[%s209 + $0x290] sm:$0xff]
        %v347 = vld [vmem:[%s209 + $0x298] sm:$0xff]
        %v348 = vld [vmem:[%s209 + $0x2a0] sm:$0xff]
        %v349 = vld [vmem:[%s209 + $0x2a8] sm:$0xff]
        %v350 = vld [vmem:[%s209 + $0x2b0] sm:$0xff]
        %v351 = vld [vmem:[%s209 + $0x2b8] sm:$0xff]
        %v352 = vld [vmem:[%s209 + $0x2c0] sm:$0xff]
        %v353 = vld [vmem:[%s209 + $0x2c8] sm:$0xff]
        %v354 = vld [vmem:[%s209 + $0x2d0] sm:$0xff]
        %v355 = vld [vmem:[%s209 + $0x2d8] sm:$0xff]
        %v356 = vld [vmem:[%s209 + $0x2e0] sm:$0xff]
        %v357 = vld [vmem:[%s209 + $0x2e8] sm:$0xff]
        %v358 = vld [vmem:[%s209 + $0x2f0] sm:$0xff]
        %v359 = vld [vmem:[%s209 + $0x2f8] sm:$0xff]
        %v360 = vld [vmem:[%s209 + $0x300] sm:$0xff]
        %v361 = vld [vmem:[%s209 + $0x308] sm:$0xff]
        %v362 = vld [vmem:[%s209 + $0x310] sm:$0xff]
        %v363 = vld [vmem:[%s209 + $0x318] sm:$0xff]
        %v364 = vld [vmem:[%s209 + $0x320] sm:$0xff]
        %v365 = vld [vmem:[%s209 + $0x328] sm:$0xff]
        %v366 = vld [vmem:[%s209 + $0x330] sm:$0xff]
        %v367 = vld [vmem:[%s209 + $0x338] sm:$0xff]
        %v368 = vld [vmem:[%s209 + $0x340] sm:$0xff]
        %v369 = vld [vmem:[%s209 + $0x348] sm:$0xff]
        %v370 = vld [vmem:[%s209 + $0x350] sm:$0xff]
        %v371 = vld [vmem:[%s209 + $0x358] sm:$0xff]
        %v372 = vld [vmem:[%s209 + $0x360] sm:$0xff]
        %v373 = vld [vmem:[%s209 + $0x368] sm:$0xff]
        %v374 = vld [vmem:[%s209 + $0x370] sm:$0xff]
        %v375 = vld [vmem:[%s209 + $0x378] sm:$0xff]
        %v376 = vld [vmem:[%s209 + $0x380] sm:$0xff]
        %v377 = vld [vmem:[%s209 + $0x388] sm:$0xff]
        %v378 = vld [vmem:[%s209 + $0x390] sm:$0xff]
        %v379 = vld [vmem:[%s209 + $0x398] sm:$0xff]
        %v380 = vld [vmem:[%s209 + $0x3a0] sm:$0xff]
        %v381 = vld [vmem:[%s209 + $0x3a8] sm:$0xff]
        %v382 = vld [vmem:[%s209 + $0x3b0] sm:$0xff]
        %v383 = vld [vmem:[%s209 + $0x3b8] sm:$0xff]
        %v384 = vld [vmem:[%s209 + $0x3c0] sm:$0xff]
        %v385 = vld [vmem:[%s209 + $0x3c8] sm:$0xff]
        %v386 = vld [vmem:[%s209 + $0x3d0] sm:$0xff]
        %v387 = vld [vmem:[%s209 + $0x3d8] sm:$0xff]
        %v388 = vld [vmem:[%s209 + $0x3e0] sm:$0xff]
        %v389 = vld [vmem:[%s209 + $0x3e8] sm:$0xff]
        %v390 = vld [vmem:[%s209 + $0x3f0] sm:$0xff]
        %v391 = vld [vmem:[%s209 + $0x3f8] sm:$0xff]
        %v392 = vld [vmem:[%s218] sm:$0xff]
        %v393 = vld [vmem:[%s218 + $0x8] sm:$0xff]
        %v394 = vld [vmem:[%s218 + $0x10] sm:$0xff]
        %v395 = vld [vmem:[%s218 + $0x18] sm:$0xff]
        %v396 = vld [vmem:[%s218 + $0x20] sm:$0xff]
        %v397 = vld [vmem:[%s218 + $0x28] sm:$0xff]
        %v398 = vld [vmem:[%s218 + $0x30] sm:$0xff]
        %v399 = vld [vmem:[%s218 + $0x38] sm:$0xff]
        %v400 = vld [vmem:[%s218 + $0x40] sm:$0xff]
        %v401 = vld [vmem:[%s218 + $0x48] sm:$0xff]
        %v402 = vld [vmem:[%s218 + $0x50] sm:$0xff]
        %v403 = vld [vmem:[%s218 + $0x58] sm:$0xff]
        %v404 = vld [vmem:[%s218 + $0x60] sm:$0xff]
        %v405 = vld [vmem:[%s218 + $0x68] sm:$0xff]
        %v406 = vld [vmem:[%s218 + $0x70] sm:$0xff]
        %v407 = vld [vmem:[%s218 + $0x78] sm:$0xff]
        %v408 = vld [vmem:[%s218 + $0x80] sm:$0xff]
        %v409 = vld [vmem:[%s218 + $0x88] sm:$0xff]
        %v410 = vld [vmem:[%s218 + $0x90] sm:$0xff]
        %v411 = vld [vmem:[%s218 + $0x98] sm:$0xff]
        %v412 = vld [vmem:[%s218 + $0xa0] sm:$0xff]
        %v413 = vld [vmem:[%s218 + $0xa8] sm:$0xff]
        %v414 = vld [vmem:[%s218 + $0xb0] sm:$0xff]
        %v415 = vld [vmem:[%s218 + $0xb8] sm:$0xff]
        %v416 = vld [vmem:[%s218 + $0xc0] sm:$0xff]
        %v417 = vld [vmem:[%s218 + $0xc8] sm:$0xff]
        %v418 = vld [vmem:[%s218 + $0xd0] sm:$0xff]
        %v419 = vld [vmem:[%s218 + $0xd8] sm:$0xff]
        %v420 = vld [vmem:[%s218 + $0xe0] sm:$0xff]
        %v421 = vld [vmem:[%s218 + $0xe8] sm:$0xff]
        %v422 = vld [vmem:[%s218 + $0xf0] sm:$0xff]
        %v423 = vld [vmem:[%s218 + $0xf8] sm:$0xff]
        %v424 = vunpack.c.0.s8 %v392
        %v425 = vunpack.c.1.s8 %v392
        %v426 = vunpack.c.2.s8 %v392
        %v427 = vunpack.c.3.s8 %v392
        %v428 = vunpack.c.0.s8 %v393
        %v429 = vunpack.c.1.s8 %v393
        %v430 = vunpack.c.2.s8 %v393
        %v431 = vunpack.c.3.s8 %v393
        %v432 = vunpack.c.0.s8 %v394
        %v433 = vunpack.c.1.s8 %v394
        %v434 = vunpack.c.2.s8 %v394
        %v435 = vunpack.c.3.s8 %v394
        %v436 = vunpack.c.0.s8 %v395
        %v437 = vunpack.c.1.s8 %v395
        %v438 = vunpack.c.2.s8 %v395
        %v439 = vunpack.c.3.s8 %v395
        %v440 = vunpack.c.0.s8 %v396
        %v441 = vunpack.c.1.s8 %v396
        %v442 = vunpack.c.2.s8 %v396
        %v443 = vunpack.c.3.s8 %v396
        %v444 = vunpack.c.0.s8 %v397
        %v445 = vunpack.c.1.s8 %v397
        %v446 = vunpack.c.2.s8 %v397
        %v447 = vunpack.c.3.s8 %v397
        %v448 = vunpack.c.0.s8 %v398
        %v449 = vunpack.c.1.s8 %v398
        %v450 = vunpack.c.2.s8 %v398
        %v451 = vunpack.c.3.s8 %v398
        %v452 = vunpack.c.0.s8 %v399
        %v453 = vunpack.c.1.s8 %v399
        %v454 = vunpack.c.2.s8 %v399
        %v455 = vunpack.c.3.s8 %v399
        %v456 = vunpack.c.0.s8 %v400
        %v457 = vunpack.c.1.s8 %v400
        %v458 = vunpack.c.2.s8 %v400
        %v459 = vunpack.c.3.s8 %v400
        %v460 = vunpack.c.0.s8 %v401
        %v461 = vunpack.c.1.s8 %v401
        %v462 = vunpack.c.2.s8 %v401
        %v463 = vunpack.c.3.s8 %v401
        %v464 = vunpack.c.0.s8 %v402
        %v465 = vunpack.c.1.s8 %v402
        %v466 = vunpack.c.2.s8 %v402
        %v467 = vunpack.c.3.s8 %v402
        %v468 = vunpack.c.0.s8 %v403
        %v469 = vunpack.c.1.s8 %v403
        %v470 = vunpack.c.2.s8 %v403
        %v471 = vunpack.c.3.s8 %v403
        %v472 = vunpack.c.0.s8 %v404
        %v473 = vunpack.c.1.s8 %v404
        %v474 = vunpack.c.2.s8 %v404
        %v475 = vunpack.c.3.s8 %v404
        %v476 = vunpack.c.0.s8 %v405
        %v477 = vunpack.c.1.s8 %v405
        %v478 = vunpack.c.2.s8 %v405
        %v479 = vunpack.c.3.s8 %v405
        %v480 = vunpack.c.0.s8 %v406
        %v481 = vunpack.c.1.s8 %v406
        %v482 = vunpack.c.2.s8 %v406
        %v483 = vunpack.c.3.s8 %v406
        %v484 = vunpack.c.0.s8 %v407
        %v485 = vunpack.c.1.s8 %v407
        %v486 = vunpack.c.2.s8 %v407
        %v487 = vunpack.c.3.s8 %v407
        %v488 = vunpack.c.0.s8 %v408
        %v489 = vunpack.c.1.s8 %v408
        %v490 = vunpack.c.2.s8 %v408
        %v491 = vunpack.c.3.s8 %v408
        %v492 = vunpack.c.0.s8 %v409
        %v493 = vunpack.c.1.s8 %v409
        %v494 = vunpack.c.2.s8 %v409
        %v495 = vunpack.c.3.s8 %v409
        %v496 = vunpack.c.0.s8 %v410
        %v497 = vunpack.c.1.s8 %v410
        %v498 = vunpack.c.2.s8 %v410
        %v499 = vunpack.c.3.s8 %v410
        %v500 = vunpack.c.0.s8 %v411
        %v501 = vunpack.c.1.s8 %v411
        %v502 = vunpack.c.2.s8 %v411
        %v503 = vunpack.c.3.s8 %v411
        %v504 = vunpack.c.0.s8 %v412
        %v505 = vunpack.c.1.s8 %v412
        %v506 = vunpack.c.2.s8 %v412
        %v507 = vunpack.c.3.s8 %v412
        %v508 = vunpack.c.0.s8 %v413
        %v509 = vunpack.c.1.s8 %v413
        %v510 = vunpack.c.2.s8 %v413
        %v511 = vunpack.c.3.s8 %v413
        %v512 = vunpack.c.0.s8 %v414
        %v513 = vunpack.c.1.s8 %v414
        %v514 = vunpack.c.2.s8 %v414
        %v515 = vunpack.c.3.s8 %v414
        %v516 = vunpack.c.0.s8 %v415
        %v517 = vunpack.c.1.s8 %v415
        %v518 = vunpack.c.2.s8 %v415
        %v519 = vunpack.c.3.s8 %v415
        %v520 = vunpack.c.0.s8 %v416
        %v521 = vunpack.c.1.s8 %v416
        %v522 = vunpack.c.2.s8 %v416
        %v523 = vunpack.c.3.s8 %v416
        %v524 = vunpack.c.0.s8 %v417
        %v525 = vunpack.c.1.s8 %v417
        %v526 = vunpack.c.2.s8 %v417
        %v527 = vunpack.c.3.s8 %v417
        %v528 = vunpack.c.0.s8 %v418
        %v529 = vunpack.c.1.s8 %v418
        %v530 = vunpack.c.2.s8 %v418
        %v531 = vunpack.c.3.s8 %v418
        %v532 = vunpack.c.0.s8 %v419
        %v533 = vunpack.c.1.s8 %v419
        %v534 = vunpack.c.2.s8 %v419
        %v535 = vunpack.c.3.s8 %v419
        %v536 = vunpack.c.0.s8 %v420
        %v537 = vunpack.c.1.s8 %v420
        %v538 = vunpack.c.2.s8 %v420
        %v539 = vunpack.c.3.s8 %v420
        %v540 = vunpack.c.0.s8 %v421
        %v541 = vunpack.c.1.s8 %v421
        %v542 = vunpack.c.2.s8 %v421
        %v543 = vunpack.c.3.s8 %v421
        %v544 = vunpack.c.0.s8 %v422
        %v545 = vunpack.c.1.s8 %v422
        %v546 = vunpack.c.2.s8 %v422
        %v547 = vunpack.c.3.s8 %v422
        %v548 = vunpack.c.0.s8 %v423
        %v549 = vunpack.c.1.s8 %v423
        %v550 = vunpack.c.2.s8 %v423
        %v551 = vunpack.c.3.s8 %v423
        %v552 = vcvt.s32.f32 %v424
        %v553 = vcvt.s32.f32 %v425
        %v554 = vcvt.s32.f32 %v426
        %v555 = vcvt.s32.f32 %v427
        %v556 = vcvt.s32.f32 %v428
        %v557 = vcvt.s32.f32 %v429
        %v558 = vcvt.s32.f32 %v430
        %v559 = vcvt.s32.f32 %v431
        %v560 = vcvt.s32.f32 %v432
        %v561 = vcvt.s32.f32 %v433
        %v562 = vcvt.s32.f32 %v434
        %v563 = vcvt.s32.f32 %v435
        %v564 = vcvt.s32.f32 %v436
        %v565 = vcvt.s32.f32 %v437
        %v566 = vcvt.s32.f32 %v438
        %v567 = vcvt.s32.f32 %v439
        %v568 = vcvt.s32.f32 %v440
        %v569 = vcvt.s32.f32 %v441
        %v570 = vcvt.s32.f32 %v442
        %v571 = vcvt.s32.f32 %v443
        %v572 = vcvt.s32.f32 %v444
        %v573 = vcvt.s32.f32 %v445
        %v574 = vcvt.s32.f32 %v446
        %v575 = vcvt.s32.f32 %v447
        %v576 = vcvt.s32.f32 %v448
        %v577 = vcvt.s32.f32 %v449
        %v578 = vcvt.s32.f32 %v450
        %v579 = vcvt.s32.f32 %v451
        %v580 = vcvt.s32.f32 %v452
        %v581 = vcvt.s32.f32 %v453
        %v582 = vcvt.s32.f32 %v454
        %v583 = vcvt.s32.f32 %v455
        %v584 = vcvt.s32.f32 %v456
        %v585 = vcvt.s32.f32 %v457
        %v586 = vcvt.s32.f32 %v458
        %v587 = vcvt.s32.f32 %v459
        %v588 = vcvt.s32.f32 %v460
        %v589 = vcvt.s32.f32 %v461
        %v590 = vcvt.s32.f32 %v462
        %v591 = vcvt.s32.f32 %v463
        %v592 = vcvt.s32.f32 %v464
        %v593 = vcvt.s32.f32 %v465
        %v594 = vcvt.s32.f32 %v466
        %v595 = vcvt.s32.f32 %v467
        %v596 = vcvt.s32.f32 %v468
        %v597 = vcvt.s32.f32 %v469
        %v598 = vcvt.s32.f32 %v470
        %v599 = vcvt.s32.f32 %v471
        %v600 = vcvt.s32.f32 %v472
        %v601 = vcvt.s32.f32 %v473
        %v602 = vcvt.s32.f32 %v474
        %v603 = vcvt.s32.f32 %v475
        %v604 = vcvt.s32.f32 %v476
        %v605 = vcvt.s32.f32 %v477
        %v606 = vcvt.s32.f32 %v478
        %v607 = vcvt.s32.f32 %v479
        %v608 = vcvt.s32.f32 %v480
        %v609 = vcvt.s32.f32 %v481
        %v610 = vcvt.s32.f32 %v482
        %v611 = vcvt.s32.f32 %v483
        %v612 = vcvt.s32.f32 %v484
        %v613 = vcvt.s32.f32 %v485
        %v614 = vcvt.s32.f32 %v486
        %v615 = vcvt.s32.f32 %v487
        %v616 = vcvt.s32.f32 %v488
        %v617 = vcvt.s32.f32 %v489
        %v618 = vcvt.s32.f32 %v490
        %v619 = vcvt.s32.f32 %v491
        %v620 = vcvt.s32.f32 %v492
        %v621 = vcvt.s32.f32 %v493
        %v622 = vcvt.s32.f32 %v494
        %v623 = vcvt.s32.f32 %v495
        %v624 = vcvt.s32.f32 %v496
        %v625 = vcvt.s32.f32 %v497
        %v626 = vcvt.s32.f32 %v498
        %v627 = vcvt.s32.f32 %v499
        %v628 = vcvt.s32.f32 %v500
        %v629 = vcvt.s32.f32 %v501
        %v630 = vcvt.s32.f32 %v502
        %v631 = vcvt.s32.f32 %v503
        %v632 = vcvt.s32.f32 %v504
        %v633 = vcvt.s32.f32 %v505
        %v634 = vcvt.s32.f32 %v506
        %v635 = vcvt.s32.f32 %v507
        %v636 = vcvt.s32.f32 %v508
        %v637 = vcvt.s32.f32 %v509
        %v638 = vcvt.s32.f32 %v510
        %v639 = vcvt.s32.f32 %v511
        %v640 = vcvt.s32.f32 %v512
        %v641 = vcvt.s32.f32 %v513
        %v642 = vcvt.s32.f32 %v514
        %v643 = vcvt.s32.f32 %v515
        %v644 = vcvt.s32.f32 %v516
        %v645 = vcvt.s32.f32 %v517
        %v646 = vcvt.s32.f32 %v518
        %v647 = vcvt.s32.f32 %v519
        %v648 = vcvt.s32.f32 %v520
        %v649 = vcvt.s32.f32 %v521
        %v650 = vcvt.s32.f32 %v522
        %v651 = vcvt.s32.f32 %v523
        %v652 = vcvt.s32.f32 %v524
        %v653 = vcvt.s32.f32 %v525
        %v654 = vcvt.s32.f32 %v526
        %v655 = vcvt.s32.f32 %v527
        %v656 = vcvt.s32.f32 %v528
        %v657 = vcvt.s32.f32 %v529
        %v658 = vcvt.s32.f32 %v530
        %v659 = vcvt.s32.f32 %v531
        %v660 = vcvt.s32.f32 %v532
        %v661 = vcvt.s32.f32 %v533
        %v662 = vcvt.s32.f32 %v534
        %v663 = vcvt.s32.f32 %v535
        %v664 = vcvt.s32.f32 %v536
        %v665 = vcvt.s32.f32 %v537
        %v666 = vcvt.s32.f32 %v538
        %v667 = vcvt.s32.f32 %v539
        %v668 = vcvt.s32.f32 %v540
        %v669 = vcvt.s32.f32 %v541
        %v670 = vcvt.s32.f32 %v542
        %v671 = vcvt.s32.f32 %v543
        %v672 = vcvt.s32.f32 %v544
        %v673 = vcvt.s32.f32 %v545
        %v674 = vcvt.s32.f32 %v546
        %v675 = vcvt.s32.f32 %v547
        %v676 = vcvt.s32.f32 %v548
        %v677 = vcvt.s32.f32 %v549
        %v678 = vcvt.s32.f32 %v550
        %v679 = vcvt.s32.f32 %v551
        %s680 = sld [smem:[#allocation2]]
        %v681 = vsub.f32 1.0, %v552
        %v682 = vsub.f32 1.0, %v553
        %v683 = vsub.f32 1.0, %v554
        %v684 = vsub.f32 1.0, %v555
        %v685 = vsub.f32 1.0, %v556
        %v686 = vsub.f32 1.0, %v557
        %v687 = vsub.f32 1.0, %v558
        %v688 = vsub.f32 1.0, %v559
        %v689 = vsub.f32 1.0, %v560
        %v690 = vsub.f32 1.0, %v561
        %v691 = vsub.f32 1.0, %v562
        %v692 = vsub.f32 1.0, %v563
        %v693 = vsub.f32 1.0, %v564
        %v694 = vsub.f32 1.0, %v565
        %v695 = vsub.f32 1.0, %v566
        %v696 = vsub.f32 1.0, %v567
        %v697 = vsub.f32 1.0, %v568
        %v698 = vsub.f32 1.0, %v569
        %v699 = vsub.f32 1.0, %v570
        %v700 = vsub.f32 1.0, %v571
        %v701 = vsub.f32 1.0, %v572
        %v702 = vsub.f32 1.0, %v573
        %v703 = vsub.f32 1.0, %v574
        %v704 = vsub.f32 1.0, %v575
        %v705 = vsub.f32 1.0, %v576
        %v706 = vsub.f32 1.0, %v577
        %v707 = vsub.f32 1.0, %v578
        %v708 = vsub.f32 1.0, %v579
        %v709 = vsub.f32 1.0, %v580
        %v710 = vsub.f32 1.0, %v581
        %v711 = vsub.f32 1.0, %v582
        %v712 = vsub.f32 1.0, %v583
        %v713 = vsub.f32 1.0, %v584
        %v714 = vsub.f32 1.0, %v585
        %v715 = vsub.f32 1.0, %v586
        %v716 = vsub.f32 1.0, %v587
        %v717 = vsub.f32 1.0, %v588
        %v718 = vsub.f32 1.0, %v589
        %v719 = vsub.f32 1.0, %v590
        %v720 = vsub.f32 1.0, %v591
        %v721 = vsub.f32 1.0, %v592
        %v722 = vsub.f32 1.0, %v593
        %v723 = vsub.f32 1.0, %v594
        %v724 = vsub.f32 1.0, %v595
        %v725 = vsub.f32 1.0, %v596
        %v726 = vsub.f32 1.0, %v597
        %v727 = vsub.f32 1.0, %v598
        %v728 = vsub.f32 1.0, %v599
        %v729 = vsub.f32 1.0, %v600
        %v730 = vsub.f32 1.0, %v601
        %v731 = vsub.f32 1.0, %v602
        %v732 = vsub.f32 1.0, %v603
        %v733 = vsub.f32 1.0, %v604
        %v734 = vsub.f32 1.0, %v605
        %v735 = vsub.f32 1.0, %v606
        %v736 = vsub.f32 1.0, %v607
        %v737 = vsub.f32 1.0, %v608
        %v738 = vsub.f32 1.0, %v609
        %v739 = vsub.f32 1.0, %v610
        %v740 = vsub.f32 1.0, %v611
        %v741 = vsub.f32 1.0, %v612
        %v742 = vsub.f32 1.0, %v613
        %v743 = vsub.f32 1.0, %v614
        %v744 = vsub.f32 1.0, %v615
        %v745 = vsub.f32 1.0, %v616
        %v746 = vsub.f32 1.0, %v617
        %v747 = vsub.f32 1.0, %v618
        %v748 = vsub.f32 1.0, %v619
        %v749 = vsub.f32 1.0, %v620
        %v750 = vsub.f32 1.0, %v621
        %v751 = vsub.f32 1.0, %v622
        %v752 = vsub.f32 1.0, %v623
        %v753 = vsub.f32 1.0, %v624
        %v754 = vsub.f32 1.0, %v625
        %v755 = vsub.f32 1.0, %v626
        %v756 = vsub.f32 1.0, %v627
        %v757 = vsub.f32 1.0, %v628
        %v758 = vsub.f32 1.0, %v629
        %v759 = vsub.f32 1.0, %v630
        %v760 = vsub.f32 1.0, %v631
        %v761 = vsub.f32 1.0, %v632
        %v762 = vsub.f32 1.0, %v633
        %v763 = vsub.f32 1.0, %v634
        %v764 = vsub.f32 1.0, %v635
        %v765 = vsub.f32 1.0, %v636
        %v766 = vsub.f32 1.0, %v637
        %v767 = vsub.f32 1.0, %v638
        %v768 = vsub.f32 1.0, %v639
        %v769 = vsub.f32 1.0, %v640
        %v770 = vsub.f32 1.0, %v641
        %v771 = vsub.f32 1.0, %v642
        %v772 = vsub.f32 1.0, %v643
        %v773 = vsub.f32 1.0, %v644
        %v774 = vsub.f32 1.0, %v645
        %v775 = vsub.f32 1.0, %v646
        %v776 = vsub.f32 1.0, %v647
        %v777 = vsub.f32 1.0, %v648
        %v778 = vsub.f32 1.0, %v649
        %v779 = vsub.f32 1.0, %v650
        %v780 = vsub.f32 1.0, %v651
        %v781 = vsub.f32 1.0, %v652
        %v782 = vsub.f32 1.0, %v653
        %v783 = vsub.f32 1.0, %v654
        %v784 = vsub.f32 1.0, %v655
        %v785 = vsub.f32 1.0, %v656
        %v786 = vsub.f32 1.0, %v657
        %v787 = vsub.f32 1.0, %v658
        %v788 = vsub.f32 1.0, %v659
        %v789 = vsub.f32 1.0, %v660
        %v790 = vsub.f32 1.0, %v661
        %v791 = vsub.f32 1.0, %v662
        %v792 = vsub.f32 1.0, %v663
        %v793 = vsub.f32 1.0, %v664
        %v794 = vsub.f32 1.0, %v665
        %v795 = vsub.f32 1.0, %v666
        %v796 = vsub.f32 1.0, %v667
        %v797 = vsub.f32 1.0, %v668
        %v798 = vsub.f32 1.0, %v669
        %v799 = vsub.f32 1.0, %v670
        %v800 = vsub.f32 1.0, %v671
        %v801 = vsub.f32 1.0, %v672
        %v802 = vsub.f32 1.0, %v673
        %v803 = vsub.f32 1.0, %v674
        %v804 = vsub.f32 1.0, %v675
        %v805 = vsub.f32 1.0, %v676
        %v806 = vsub.f32 1.0, %v677
        %v807 = vsub.f32 1.0, %v678
        %v808 = vsub.f32 1.0, %v679
        %v809 = vmul.f32 %v264, %v681
        %v810 = vmul.f32 %v265, %v682
        %v811 = vmul.f32 %v266, %v683
        %v812 = vmul.f32 %v267, %v684
        %v813 = vmul.f32 %v268, %v685
        %v814 = vmul.f32 %v269, %v686
        %v815 = vmul.f32 %v270, %v687
        %v816 = vmul.f32 %v271, %v688
        %v817 = vmul.f32 %v272, %v689
        %v818 = vmul.f32 %v273, %v690
        %v819 = vmul.f32 %v274, %v691
        %v820 = vmul.f32 %v275, %v692
        %v821 = vmul.f32 %v276, %v693
        %v822 = vmul.f32 %v277, %v694
        %v823 = vmul.f32 %v278, %v695
        %v824 = vmul.f32 %v279, %v696
        %v825 = vmul.f32 %v280, %v697
        %v826 = vmul.f32 %v281, %v698
        %v827 = vmul.f32 %v282, %v699
        %v828 = vmul.f32 %v283, %v700
        %v829 = vmul.f32 %v284, %v701
        %v830 = vmul.f32 %v285, %v702
        %v831 = vmul.f32 %v286, %v703
        %v832 = vmul.f32 %v287, %v704
        %v833 = vmul.f32 %v288, %v705
        %v834 = vmul.f32 %v289, %v706
        %v835 = vmul.f32 %v290, %v707
        %v836 = vmul.f32 %v291, %v708
        %v837 = vmul.f32 %v292, %v709
        %v838 = vmul.f32 %v293, %v710
        %v839 = vmul.f32 %v294, %v711
        %v840 = vmul.f32 %v295, %v712
        %v841 = vmul.f32 %v296, %v713
        %v842 = vmul.f32 %v297, %v714
        %v843 = vmul.f32 %v298, %v715
        %v844 = vmul.f32 %v299, %v716
        %v845 = vmul.f32 %v300, %v717
        %v846 = vmul.f32 %v301, %v718
        %v847 = vmul.f32 %v302, %v719
        %v848 = vmul.f32 %v303, %v720
        %v849 = vmul.f32 %v304, %v721
        %v850 = vmul.f32 %v305, %v722
        %v851 = vmul.f32 %v306, %v723
        %v852 = vmul.f32 %v307, %v724
        %v853 = vmul.f32 %v308, %v725
        %v854 = vmul.f32 %v309, %v726
        %v855 = vmul.f32 %v310, %v727
        %v856 = vmul.f32 %v311, %v728
        %v857 = vmul.f32 %v312, %v729
        %v858 = vmul.f32 %v313, %v730
        %v859 = vmul.f32 %v314, %v731
        %v860 = vmul.f32 %v315, %v732
        %v861 = vmul.f32 %v316, %v733
        %v862 = vmul.f32 %v317, %v734
        %v863 = vmul.f32 %v318, %v735
        %v864 = vmul.f32 %v319, %v736
        %v865 = vmul.f32 %v320, %v737
        %v866 = vmul.f32 %v321, %v738
        %v867 = vmul.f32 %v322, %v739
        %v868 = vmul.f32 %v323, %v740
        %v869 = vmul.f32 %v324, %v741
        %v870 = vmul.f32 %v325, %v742
        %v871 = vmul.f32 %v326, %v743
        %v872 = vmul.f32 %v327, %v744
        %v873 = vmul.f32 %v328, %v745
        %v874 = vmul.f32 %v329, %v746
        %v875 = vmul.f32 %v330, %v747
        %v876 = vmul.f32 %v331, %v748
        %v877 = vmul.f32 %v332, %v749
        %v878 = vmul.f32 %v333, %v750
        %v879 = vmul.f32 %v334, %v751
        %v880 = vmul.f32 %v335, %v752
        %v881 = vmul.f32 %v336, %v753
        %v882 = vmul.f32 %v337, %v754
        %v883 = vmul.f32 %v338, %v755
        %v884 = vmul.f32 %v339, %v756
        %v885 = vmul.f32 %v340, %v757
        %v886 = vmul.f32 %v341, %v758
        %v887 = vmul.f32 %v342, %v759
        %v888 = vmul.f32 %v343, %v760
        %v889 = vmul.f32 %v344, %v761
        %v890 = vmul.f32 %v345, %v762
        %v891 = vmul.f32 %v346, %v763
        %v892 = vmul.f32 %v347, %v764
        %v893 = vmul.f32 %v348, %v765
        %v894 = vmul.f32 %v349, %v766
        %v895 = vmul.f32 %v350, %v767
        %v896 = vmul.f32 %v351, %v768
        %v897 = vmul.f32 %v352, %v769
        %v898 = vmul.f32 %v353, %v770
        %v899 = vmul.f32 %v354, %v771
        %v900 = vmul.f32 %v355, %v772
        %v901 = vmul.f32 %v356, %v773
        %v902 = vmul.f32 %v357, %v774
        %v903 = vmul.f32 %v358, %v775
        %v904 = vmul.f32 %v359, %v776
        %v905 = vmul.f32 %v360, %v777
        %v906 = vmul.f32 %v361, %v778
        %v907 = vmul.f32 %v362, %v779
        %v908 = vmul.f32 %v363, %v780
        %v909 = vmul.f32 %v364, %v781
        %v910 = vmul.f32 %v365, %v782
        %v911 = vmul.f32 %v366, %v783
        %v912 = vmul.f32 %v367, %v784
        %v913 = vmul.f32 %v368, %v785
        %v914 = vmul.f32 %v369, %v786
        %v915 = vmul.f32 %v370, %v787
        %v916 = vmul.f32 %v371, %v788
        %v917 = vmul.f32 %v372, %v789
        %v918 = vmul.f32 %v373, %v790
        %v919 = vmul.f32 %v374, %v791
        %v920 = vmul.f32 %v375, %v792
        %v921 = vmul.f32 %v376, %v793
        %v922 = vmul.f32 %v377, %v794
        %v923 = vmul.f32 %v378, %v795
        %v924 = vmul.f32 %v379, %v796
        %v925 = vmul.f32 %v380, %v797
        %v926 = vmul.f32 %v381, %v798
        %v927 = vmul.f32 %v382, %v799
        %v928 = vmul.f32 %v383, %v800
        %v929 = vmul.f32 %v384, %v801
        %v930 = vmul.f32 %v385, %v802
        %v931 = vmul.f32 %v386, %v803
        %v932 = vmul.f32 %v387, %v804
        %v933 = vmul.f32 %v388, %v805
        %v934 = vmul.f32 %v389, %v806
        %v935 = vmul.f32 %v390, %v807
        %v936 = vmul.f32 %v391, %v808
        %v937 = vstv %s680
        %v938 = vmul.f32 %v937, %v552
        %v939 = vmul.f32 %v937, %v553
        %v940 = vmul.f32 %v937, %v554
        %v941 = vmul.f32 %v937, %v555
        %v942 = vmul.f32 %v937, %v556
        %v943 = vmul.f32 %v937, %v557
        %v944 = vmul.f32 %v937, %v558
        %v945 = vmul.f32 %v937, %v559
        %v946 = vmul.f32 %v937, %v560
        %v947 = vmul.f32 %v937, %v561
        %v948 = vmul.f32 %v937, %v562
        %v949 = vmul.f32 %v937, %v563
        %v950 = vmul.f32 %v937, %v564
        %v951 = vmul.f32 %v937, %v565
        %v952 = vmul.f32 %v937, %v566
        %v953 = vmul.f32 %v937, %v567
        %v954 = vmul.f32 %v937, %v568
        %v955 = vmul.f32 %v937, %v569
        %v956 = vmul.f32 %v937, %v570
        %v957 = vmul.f32 %v937, %v571
        %v958 = vmul.f32 %v937, %v572
        %v959 = vmul.f32 %v937, %v573
        %v960 = vmul.f32 %v937, %v574
        %v961 = vmul.f32 %v937, %v575
        %v962 = vmul.f32 %v937, %v576
        %v963 = vmul.f32 %v937, %v577
        %v964 = vmul.f32 %v937, %v578
        %v965 = vmul.f32 %v937, %v579
        %v966 = vmul.f32 %v937, %v580
        %v967 = vmul.f32 %v937, %v581
        %v968 = vmul.f32 %v937, %v582
        %v969 = vmul.f32 %v937, %v583
        %v970 = vmul.f32 %v937, %v584
        %v971 = vmul.f32 %v937, %v585
        %v972 = vmul.f32 %v937, %v586
        %v973 = vmul.f32 %v937, %v587
        %v974 = vmul.f32 %v937, %v588
        %v975 = vmul.f32 %v937, %v589
        %v976 = vmul.f32 %v937, %v590
        %v977 = vmul.f32 %v937, %v591
        %v978 = vmul.f32 %v937, %v592
        %v979 = vmul.f32 %v937, %v593
        %v980 = vmul.f32 %v937, %v594
        %v981 = vmul.f32 %v937, %v595
        %v982 = vmul.f32 %v937, %v596
        %v983 = vmul.f32 %v937, %v597
        %v984 = vmul.f32 %v937, %v598
        %v985 = vmul.f32 %v937, %v599
        %v986 = vmul.f32 %v937, %v600
        %v987 = vmul.f32 %v937, %v601
        %v988 = vmul.f32 %v937, %v602
        %v989 = vmul.f32 %v937, %v603
        %v990 = vmul.f32 %v937, %v604
        %v991 = vmul.f32 %v937, %v605
        %v992 = vmul.f32 %v937, %v606
        %v993 = vmul.f32 %v937, %v607
        %v994 = vmul.f32 %v937, %v608
        %v995 = vmul.f32 %v937, %v609
        %v996 = vmul.f32 %v937, %v610
        %v997 = vmul.f32 %v937, %v611
        %v998 = vmul.f32 %v937, %v612
        %v999 = vmul.f32 %v937, %v613
        %v1000 = vmul.f32 %v937, %v614
        %v1001 = vmul.f32 %v937, %v615
        %v1002 = vmul.f32 %v937, %v616
        %v1003 = vmul.f32 %v937, %v617
        %v1004 = vmul.f32 %v937, %v618
        %v1005 = vmul.f32 %v937, %v619
        %v1006 = vmul.f32 %v937, %v620
        %v1007 = vmul.f32 %v937, %v621
        %v1008 = vmul.f32 %v937, %v622
        %v1009 = vmul.f32 %v937, %v623
        %v1010 = vmul.f32 %v937, %v624
        %v1011 = vmul.f32 %v937, %v625
        %v1012 = vmul.f32 %v937, %v626
        %v1013 = vmul.f32 %v937, %v627
        %v1014 = vmul.f32 %v937, %v628
        %v1015 = vmul.f32 %v937, %v629
        %v1016 = vmul.f32 %v937, %v630
        %v1017 = vmul.f32 %v937, %v631
        %v1018 = vmul.f32 %v937, %v632
        %v1019 = vmul.f32 %v937, %v633
        %v1020 = vmul.f32 %v937, %v634
        %v1021 = vmul.f32 %v937, %v635
        %v1022 = vmul.f32 %v937, %v636
        %v1023 = vmul.f32 %v937, %v637
        %v1024 = vmul.f32 %v937, %v638
        %v1025 = vmul.f32 %v937, %v639
        %v1026 = vmul.f32 %v937, %v640
        %v1027 = vmul.f32 %v937, %v641
        %v1028 = vmul.f32 %v937, %v642
        %v1029 = vmul.f32 %v937, %v643
        %v1030 = vmul.f32 %v937, %v644
        %v1031 = vmul.f32 %v937, %v645
        %v1032 = vmul.f32 %v937, %v646
        %v1033 = vmul.f32 %v937, %v647
        %v1034 = vmul.f32 %v937, %v648
        %v1035 = vmul.f32 %v937, %v649
        %v1036 = vmul.f32 %v937, %v650
        %v1037 = vmul.f32 %v937, %v651
        %v1038 = vmul.f32 %v937, %v652
        %v1039 = vmul.f32 %v937, %v653
        %v1040 = vmul.f32 %v937, %v654
        %v1041 = vmul.f32 %v937, %v655
        %v1042 = vmul.f32 %v937, %v656
        %v1043 = vmul.f32 %v937, %v657
        %v1044 = vmul.f32 %v937, %v658
        %v1045 = vmul.f32 %v937, %v659
        %v1046 = vmul.f32 %v937, %v660
        %v1047 = vmul.f32 %v937, %v661
        %v1048 = vmul.f32 %v937, %v662
        %v1049 = vmul.f32 %v937, %v663
        %v1050 = vmul.f32 %v937, %v664
        %v1051 = vmul.f32 %v937, %v665
        %v1052 = vmul.f32 %v937, %v666
        %v1053 = vmul.f32 %v937, %v667
        %v1054 = vmul.f32 %v937, %v668
        %v1055 = vmul.f32 %v937, %v669
        %v1056 = vmul.f32 %v937, %v670
        %v1057 = vmul.f32 %v937, %v671
        %v1058 = vmul.f32 %v937, %v672
        %v1059 = vmul.f32 %v937, %v673
        %v1060 = vmul.f32 %v937, %v674
        %v1061 = vmul.f32 %v937, %v675
        %v1062 = vmul.f32 %v937, %v676
        %v1063 = vmul.f32 %v937, %v677
        %v1064 = vmul.f32 %v937, %v678
        %v1065 = vmul.f32 %v937, %v679
        %v1066 = vadd.f32 %v809, %v938
        %v1067 = vadd.f32 %v810, %v939
        %v1068 = vadd.f32 %v811, %v940
        %v1069 = vadd.f32 %v812, %v941
        %v1070 = vadd.f32 %v813, %v942
        %v1071 = vadd.f32 %v814, %v943
        %v1072 = vadd.f32 %v815, %v944
        %v1073 = vadd.f32 %v816, %v945
        %v1074 = vadd.f32 %v817, %v946
        %v1075 = vadd.f32 %v818, %v947
        %v1076 = vadd.f32 %v819, %v948
        %v1077 = vadd.f32 %v820, %v949
        %v1078 = vadd.f32 %v821, %v950
        %v1079 = vadd.f32 %v822, %v951
        %v1080 = vadd.f32 %v823, %v952
        %v1081 = vadd.f32 %v824, %v953
        %v1082 = vadd.f32 %v825, %v954
        %v1083 = vadd.f32 %v826, %v955
        %v1084 = vadd.f32 %v827, %v956
        %v1085 = vadd.f32 %v828, %v957
        %v1086 = vadd.f32 %v829, %v958
        %v1087 = vadd.f32 %v830, %v959
        %v1088 = vadd.f32 %v831, %v960
        %v1089 = vadd.f32 %v832, %v961
        %v1090 = vadd.f32 %v833, %v962
        %v1091 = vadd.f32 %v834, %v963
        %v1092 = vadd.f32 %v835, %v964
        %v1093 = vadd.f32 %v836, %v965
        %v1094 = vadd.f32 %v837, %v966
        %v1095 = vadd.f32 %v838, %v967
        %v1096 = vadd.f32 %v839, %v968
        %v1097 = vadd.f32 %v840, %v969
        %v1098 = vadd.f32 %v841, %v970
        %v1099 = vadd.f32 %v842, %v971
        %v1100 = vadd.f32 %v843, %v972
        %v1101 = vadd.f32 %v844, %v973
        %v1102 = vadd.f32 %v845, %v974
        %v1103 = vadd.f32 %v846, %v975
        %v1104 = vadd.f32 %v847, %v976
        %v1105 = vadd.f32 %v848, %v977
        %v1106 = vadd.f32 %v849, %v978
        %v1107 = vadd.f32 %v850, %v979
        %v1108 = vadd.f32 %v851, %v980
        %v1109 = vadd.f32 %v852, %v981
        %v1110 = vadd.f32 %v853, %v982
        %v1111 = vadd.f32 %v854, %v983
        %v1112 = vadd.f32 %v855, %v984
        %v1113 = vadd.f32 %v856, %v985
        %v1114 = vadd.f32 %v857, %v986
        %v1115 = vadd.f32 %v858, %v987
        %v1116 = vadd.f32 %v859, %v988
        %v1117 = vadd.f32 %v860, %v989
        %v1118 = vadd.f32 %v861, %v990
        %v1119 = vadd.f32 %v862, %v991
        %v1120 = vadd.f32 %v863, %v992
        %v1121 = vadd.f32 %v864, %v993
        %v1122 = vadd.f32 %v865, %v994
        %v1123 = vadd.f32 %v866, %v995
        %v1124 = vadd.f32 %v867, %v996
        %v1125 = vadd.f32 %v868, %v997
        %v1126 = vadd.f32 %v869, %v998
        %v1127 = vadd.f32 %v870, %v999
        %v1128 = vadd.f32 %v871, %v1000
        %v1129 = vadd.f32 %v872, %v1001
        %v1130 = vadd.f32 %v873, %v1002
        %v1131 = vadd.f32 %v874, %v1003
        %v1132 = vadd.f32 %v875, %v1004
        %v1133 = vadd.f32 %v876, %v1005
        %v1134 = vadd.f32 %v877, %v1006
        %v1135 = vadd.f32 %v878, %v1007
        %v1136 = vadd.f32 %v879, %v1008
        %v1137 = vadd.f32 %v880, %v1009
        %v1138 = vadd.f32 %v881, %v1010
        %v1139 = vadd.f32 %v882, %v1011
        %v1140 = vadd.f32 %v883, %v1012
        %v1141 = vadd.f32 %v884, %v1013
        %v1142 = vadd.f32 %v885, %v1014
        %v1143 = vadd.f32 %v886, %v1015
        %v1144 = vadd.f32 %v887, %v1016
        %v1145 = vadd.f32 %v888, %v1017
        %v1146 = vadd.f32 %v889, %v1018
        %v1147 = vadd.f32 %v890, %v1019
        %v1148 = vadd.f32 %v891, %v1020
        %v1149 = vadd.f32 %v892, %v1021
        %v1150 = vadd.f32 %v893, %v1022
        %v1151 = vadd.f32 %v894, %v1023
        %v1152 = vadd.f32 %v895, %v1024
        %v1153 = vadd.f32 %v896, %v1025
        %v1154 = vadd.f32 %v897, %v1026
        %v1155 = vadd.f32 %v898, %v1027
        %v1156 = vadd.f32 %v899, %v1028
        %v1157 = vadd.f32 %v900, %v1029
        %v1158 = vadd.f32 %v901, %v1030
        %v1159 = vadd.f32 %v902, %v1031
        %v1160 = vadd.f32 %v903, %v1032
        %v1161 = vadd.f32 %v904, %v1033
        %v1162 = vadd.f32 %v905, %v1034
        %v1163 = vadd.f32 %v906, %v1035
        %v1164 = vadd.f32 %v907, %v1036
        %v1165 = vadd.f32 %v908, %v1037
        %v1166 = vadd.f32 %v909, %v1038
        %v1167 = vadd.f32 %v910, %v1039
        %v1168 = vadd.f32 %v911, %v1040
        %v1169 = vadd.f32 %v912, %v1041
        %v1170 = vadd.f32 %v913, %v1042
        %v1171 = vadd.f32 %v914, %v1043
        %v1172 = vadd.f32 %v915, %v1044
        %v1173 = vadd.f32 %v916, %v1045
        %v1174 = vadd.f32 %v917, %v1046
        %v1175 = vadd.f32 %v918, %v1047
        %v1176 = vadd.f32 %v919, %v1048
        %v1177 = vadd.f32 %v920, %v1049
        %v1178 = vadd.f32 %v921, %v1050
        %v1179 = vadd.f32 %v922, %v1051
        %v1180 = vadd.f32 %v923, %v1052
        %v1181 = vadd.f32 %v924, %v1053
        %v1182 = vadd.f32 %v925, %v1054
        %v1183 = vadd.f32 %v926, %v1055
        %v1184 = vadd.f32 %v927, %v1056
        %v1185 = vadd.f32 %v928, %v1057
        %v1186 = vadd.f32 %v929, %v1058
        %v1187 = vadd.f32 %v930, %v1059
        %v1188 = vadd.f32 %v931, %v1060
        %v1189 = vadd.f32 %v932, %v1061
        %v1190 = vadd.f32 %v933, %v1062
        %v1191 = vadd.f32 %v934, %v1063
        %v1192 = vadd.f32 %v935, %v1064
        %v1193 = vadd.f32 %v936, %v1065
        %1194 = vst [vmem:[%s245] sm:$0xff] %v1066
        %1195 = vst [vmem:[%s245 + $0x8] sm:$0xff] %v1067
        %1196 = vst [vmem:[%s245 + $0x10] sm:$0xff] %v1068
        %1197 = vst [vmem:[%s245 + $0x18] sm:$0xff] %v1069
        %1198 = vst [vmem:[%s245 + $0x20] sm:$0xff] %v1070
        %1199 = vst [vmem:[%s245 + $0x28] sm:$0xff] %v1071
        %1200 = vst [vmem:[%s245 + $0x30] sm:$0xff] %v1072
        %1201 = vst [vmem:[%s245 + $0x38] sm:$0xff] %v1073
        %1202 = vst [vmem:[%s245 + $0x40] sm:$0xff] %v1074
        %1203 = vst [vmem:[%s245 + $0x48] sm:$0xff] %v1075
        %1204 = vst [vmem:[%s245 + $0x50] sm:$0xff] %v1076
        %1205 = vst [vmem:[%s245 + $0x58] sm:$0xff] %v1077
        %1206 = vst [vmem:[%s245 + $0x60] sm:$0xff] %v1078
        %1207 = vst [vmem:[%s245 + $0x68] sm:$0xff] %v1079
        %1208 = vst [vmem:[%s245 + $0x70] sm:$0xff] %v1080
        %1209 = vst [vmem:[%s245 + $0x78] sm:$0xff] %v1081
        %1210 = vst [vmem:[%s245 + $0x80] sm:$0xff] %v1082
        %1211 = vst [vmem:[%s245 + $0x88] sm:$0xff] %v1083
        %1212 = vst [vmem:[%s245 + $0x90] sm:$0xff] %v1084
        %1213 = vst [vmem:[%s245 + $0x98] sm:$0xff] %v1085
        %1214 = vst [vmem:[%s245 + $0xa0] sm:$0xff] %v1086
        %1215 = vst [vmem:[%s245 + $0xa8] sm:$0xff] %v1087
        %1216 = vst [vmem:[%s245 + $0xb0] sm:$0xff] %v1088
        %1217 = vst [vmem:[%s245 + $0xb8] sm:$0xff] %v1089
        %1218 = vst [vmem:[%s245 + $0xc0] sm:$0xff] %v1090
        %1219 = vst [vmem:[%s245 + $0xc8] sm:$0xff] %v1091
        %1220 = vst [vmem:[%s245 + $0xd0] sm:$0xff] %v1092
        %1221 = vst [vmem:[%s245 + $0xd8] sm:$0xff] %v1093
        %1222 = vst [vmem:[%s245 + $0xe0] sm:$0xff] %v1094
        %1223 = vst [vmem:[%s245 + $0xe8] sm:$0xff] %v1095
        %1224 = vst [vmem:[%s245 + $0xf0] sm:$0xff] %v1096
        %1225 = vst [vmem:[%s245 + $0xf8] sm:$0xff] %v1097
        %1226 = vst [vmem:[%s245 + $0x100] sm:$0xff] %v1098
        %1227 = vst [vmem:[%s245 + $0x108] sm:$0xff] %v1099
        %1228 = vst [vmem:[%s245 + $0x110] sm:$0xff] %v1100
        %1229 = vst [vmem:[%s245 + $0x118] sm:$0xff] %v1101
        %1230 = vst [vmem:[%s245 + $0x120] sm:$0xff] %v1102
        %1231 = vst [vmem:[%s245 + $0x128] sm:$0xff] %v1103
        %1232 = vst [vmem:[%s245 + $0x130] sm:$0xff] %v1104
        %1233 = vst [vmem:[%s245 + $0x138] sm:$0xff] %v1105
        %1234 = vst [vmem:[%s245 + $0x140] sm:$0xff] %v1106
        %1235 = vst [vmem:[%s245 + $0x148] sm:$0xff] %v1107
        %1236 = vst [vmem:[%s245 + $0x150] sm:$0xff] %v1108
        %1237 = vst [vmem:[%s245 + $0x158] sm:$0xff] %v1109
        %1238 = vst [vmem:[%s245 + $0x160] sm:$0xff] %v1110
        %1239 = vst [vmem:[%s245 + $0x168] sm:$0xff] %v1111
        %1240 = vst [vmem:[%s245 + $0x170] sm:$0xff] %v1112
        %1241 = vst [vmem:[%s245 + $0x178] sm:$0xff] %v1113
        %1242 = vst [vmem:[%s245 + $0x180] sm:$0xff] %v1114
        %1243 = vst [vmem:[%s245 + $0x188] sm:$0xff] %v1115
        %1244 = vst [vmem:[%s245 + $0x190] sm:$0xff] %v1116
        %1245 = vst [vmem:[%s245 + $0x198] sm:$0xff] %v1117
        %1246 = vst [vmem:[%s245 + $0x1a0] sm:$0xff] %v1118
        %1247 = vst [vmem:[%s245 + $0x1a8] sm:$0xff] %v1119
        %1248 = vst [vmem:[%s245 + $0x1b0] sm:$0xff] %v1120
        %1249 = vst [vmem:[%s245 + $0x1b8] sm:$0xff] %v1121
        %1250 = vst [vmem:[%s245 + $0x1c0] sm:$0xff] %v1122
        %1251 = vst [vmem:[%s245 + $0x1c8] sm:$0xff] %v1123
        %1252 = vst [vmem:[%s245 + $0x1d0] sm:$0xff] %v1124
        %1253 = vst [vmem:[%s245 + $0x1d8] sm:$0xff] %v1125
        %1254 = vst [vmem:[%s245 + $0x1e0] sm:$0xff] %v1126
        %1255 = vst [vmem:[%s245 + $0x1e8] sm:$0xff] %v1127
        %1256 = vst [vmem:[%s245 + $0x1f0] sm:$0xff] %v1128
        %1257 = vst [vmem:[%s245 + $0x1f8] sm:$0xff] %v1129
        %1258 = vst [vmem:[%s245 + $0x200] sm:$0xff] %v1130
        %1259 = vst [vmem:[%s245 + $0x208] sm:$0xff] %v1131
        %1260 = vst [vmem:[%s245 + $0x210] sm:$0xff] %v1132
        %1261 = vst [vmem:[%s245 + $0x218] sm:$0xff] %v1133
        %1262 = vst [vmem:[%s245 + $0x220] sm:$0xff] %v1134
        %1263 = vst [vmem:[%s245 + $0x228] sm:$0xff] %v1135
        %1264 = vst [vmem:[%s245 + $0x230] sm:$0xff] %v1136
        %1265 = vst [vmem:[%s245 + $0x238] sm:$0xff] %v1137
        %1266 = vst [vmem:[%s245 + $0x240] sm:$0xff] %v1138
        %1267 = vst [vmem:[%s245 + $0x248] sm:$0xff] %v1139
        %1268 = vst [vmem:[%s245 + $0x250] sm:$0xff] %v1140
        %1269 = vst [vmem:[%s245 + $0x258] sm:$0xff] %v1141
        %1270 = vst [vmem:[%s245 + $0x260] sm:$0xff] %v1142
        %1271 = vst [vmem:[%s245 + $0x268] sm:$0xff] %v1143
        %1272 = vst [vmem:[%s245 + $0x270] sm:$0xff] %v1144
        %1273 = vst [vmem:[%s245 + $0x278] sm:$0xff] %v1145
        %1274 = vst [vmem:[%s245 + $0x280] sm:$0xff] %v1146
        %1275 = vst [vmem:[%s245 + $0x288] sm:$0xff] %v1147
        %1276 = vst [vmem:[%s245 + $0x290] sm:$0xff] %v1148
        %1277 = vst [vmem:[%s245 + $0x298] sm:$0xff] %v1149
        %1278 = vst [vmem:[%s245 + $0x2a0] sm:$0xff] %v1150
        %1279 = vst [vmem:[%s245 + $0x2a8] sm:$0xff] %v1151
        %1280 = vst [vmem:[%s245 + $0x2b0] sm:$0xff] %v1152
        %1281 = vst [vmem:[%s245 + $0x2b8] sm:$0xff] %v1153
        %1282 = vst [vmem:[%s245 + $0x2c0] sm:$0xff] %v1154
        %1283 = vst [vmem:[%s245 + $0x2c8] sm:$0xff] %v1155
        %1284 = vst [vmem:[%s245 + $0x2d0] sm:$0xff] %v1156
        %1285 = vst [vmem:[%s245 + $0x2d8] sm:$0xff] %v1157
        %1286 = vst [vmem:[%s245 + $0x2e0] sm:$0xff] %v1158
        %1287 = vst [vmem:[%s245 + $0x2e8] sm:$0xff] %v1159
        %1288 = vst [vmem:[%s245 + $0x2f0] sm:$0xff] %v1160
        %1289 = vst [vmem:[%s245 + $0x2f8] sm:$0xff] %v1161
        %1290 = vst [vmem:[%s245 + $0x300] sm:$0xff] %v1162
        %1291 = vst [vmem:[%s245 + $0x308] sm:$0xff] %v1163
        %1292 = vst [vmem:[%s245 + $0x310] sm:$0xff] %v1164
        %1293 = vst [vmem:[%s245 + $0x318] sm:$0xff] %v1165
        %1294 = vst [vmem:[%s245 + $0x320] sm:$0xff] %v1166
        %1295 = vst [vmem:[%s245 + $0x328] sm:$0xff] %v1167
        %1296 = vst [vmem:[%s245 + $0x330] sm:$0xff] %v1168
        %1297 = vst [vmem:[%s245 + $0x338] sm:$0xff] %v1169
        %1298 = vst [vmem:[%s245 + $0x340] sm:$0xff] %v1170
        %1299 = vst [vmem:[%s245 + $0x348] sm:$0xff] %v1171
        %1300 = vst [vmem:[%s245 + $0x350] sm:$0xff] %v1172
        %1301 = vst [vmem:[%s245 + $0x358] sm:$0xff] %v1173
        %1302 = vst [vmem:[%s245 + $0x360] sm:$0xff] %v1174
        %1303 = vst [vmem:[%s245 + $0x368] sm:$0xff] %v1175
        %1304 = vst [vmem:[%s245 + $0x370] sm:$0xff] %v1176
        %1305 = vst [vmem:[%s245 + $0x378] sm:$0xff] %v1177
        %1306 = vst [vmem:[%s245 + $0x380] sm:$0xff] %v1178
        %1307 = vst [vmem:[%s245 + $0x388] sm:$0xff] %v1179
        %1308 = vst [vmem:[%s245 + $0x390] sm:$0xff] %v1180
        %1309 = vst [vmem:[%s245 + $0x398] sm:$0xff] %v1181
        %1310 = vst [vmem:[%s245 + $0x3a0] sm:$0xff] %v1182
        %1311 = vst [vmem:[%s245 + $0x3a8] sm:$0xff] %v1183
        %1312 = vst [vmem:[%s245 + $0x3b0] sm:$0xff] %v1184
        %1313 = vst [vmem:[%s245 + $0x3b8] sm:$0xff] %v1185
        %1314 = vst [vmem:[%s245 + $0x3c0] sm:$0xff] %v1186
        %1315 = vst [vmem:[%s245 + $0x3c8] sm:$0xff] %v1187
        %1316 = vst [vmem:[%s245 + $0x3d0] sm:$0xff] %v1188
        %1317 = vst [vmem:[%s245 + $0x3d8] sm:$0xff] %v1189
        %1318 = vst [vmem:[%s245 + $0x3e0] sm:$0xff] %v1190
        %1319 = vst [vmem:[%s245 + $0x3e8] sm:$0xff] %v1191
        %1320 = vst [vmem:[%s245 + $0x3f0] sm:$0xff] %v1192
        %1321 = vst [vmem:[%s245 + $0x3f8] sm:$0xff] %v1193
        %s1322 = sand.u32 %s105, 1
        %s1323 = scalar_lea.sflag [#allocation5], %s1322
        %s1324 = sand.u32 %s105, 1
        %s1325 = smul.addr %s1324, 1024
        %s1326 = scalar_lea.vmem [#allocation8], %s1325
        // Predicated region
        $region41: #{tpu_custom_call.1} parent=31 // pred_check
          %p1327 = pneg %p115
        $region42: #{tpu_custom_call.1} parent=31 // pred_check_branch
          %1329 = sbr.rel (%p1327) target = $region44
        $region43: #{tpu_custom_call.1} parent=31 // pred_region
          %s1330 = smul.u32 8, %s24
          %s1331 = ssub.s32 9, %s1330
          %p1332 = scmp.lt.s32.totalorder %s1331, 8
          %s1333 = scalar_select %p1332, %s1331, 8
          %s1334 = smul.u32 128, %s1333
          %s1335 = smul.u32 %s1334, 16
          %s1337 = ssub.s32 16384, %s1335
          %1338 = vsyncadd %s1323, %s1337
          %p1339 = scmp.ne.s32.totalorder 0, %s1335
          %s1340 = smul.addr %s1330, 16
          %s1341 = smul.addr %s1340, 128
          %s1342 = scalar_lea.hbm %s3, %s1341
          %s1343 = smul.u32 128, %s1333
          %s1344 = sshll.u32 %s1326, 4
          %s1345 = int_to_ptr.vmem [resolvable:$true] %s1344
          %s1346 = sshll.u32 %s1343, 4
          %1350 = dma.vmem_to_hbm [thread:$0]  (%p1339), %s1345, %s1346, %s1342, %s1323, 2048, 2048, 128
        $region44: #{tpu_custom_call.1} parent=31 // pred_fallthru
          _
      $region32: #{tpu_custom_call.1} parent=5 // pred_fallthru
        _
      %p1351 = scmp.le.s32.totalorder 2, %s19
      // Predicated region
      $region45: #{tpu_custom_call.1} parent=5 // pred_check
        %p1352 = pneg %p1351
      $region46: #{tpu_custom_call.1} parent=5 // pred_check_branch
        %1354 = sbr.rel (%p1352) target = $region48
      $region47: #{tpu_custom_call.1} parent=5 // pred_region
        %s1355 = ssub.s32 %s19, 2
        // Predicated region
        $region49: #{tpu_custom_call.1} parent=47 // pred_check
          %p1356 = pneg %p121
        $region50: #{tpu_custom_call.1} parent=47 // pred_check_branch
          %1358 = sbr.rel (%p1356) target = $region52
        $region51: #{tpu_custom_call.1} parent=47 // pred_region
          %s1359 = sand.u32 %s106, 1
          %s1360 = scalar_lea.sflag [#allocation5], %s1359
          %s1361 = sand.u32 %s106, 1
          %s1362 = smul.addr %s1361, 1024
          %s1363 = scalar_lea.vmem [#allocation8], %s1362
          %1364 = dma.done %s1360, 16384
        $region52: #{tpu_custom_call.1} parent=47 // pred_fallthru
          _
      $region48: #{tpu_custom_call.1} parent=5 // pred_fallthru
        _
    $region6: #{tpu_custom_call.1} parent=1 // loop_footer
      %s23 = sadd.s32 1, %s19
    $region7: #{tpu_custom_call.1} parent=1 // loop_footer_branch
      %18 = sbr.rel target = $region3
    $region8: #{tpu_custom_call.1} parent=1 // loop_exit
      _
    %1365 = vsyncpa [#allocation4], 1
    %s1366 = scalar_lea.sflag [#allocation4], 1
    %1367 = vsyncpa %s1366, 1
    %1368 = vsyncpa [#allocation7], 1
    %s1369 = scalar_lea.sflag [#allocation7], 1
    %1370 = vsyncpa %s1369, 1
    %1371 = vsyncpa [#allocation5], 1
    %s1372 = scalar_lea.sflag [#allocation5], 1
    %1373 = vsyncpa %s1372, 1

</llo_original>
